<compile_context>
chip_gen: v7x
topology: tpu7x:2x2x1
jax: 0.10.0
libtpu: 0.0.40
codegen_flags: <defaults>
</compile_context>

<pallas_src>
import functools

import jax
import jax.numpy as jnp
from jax.experimental import pallas as pl
from jax.experimental.pallas import tpu as pltpu


# ---------------------------------------------------------------------------
# Stage 1: gating path -> per-(batch, head) k-projection vector w2 (B, H, C).
# ---------------------------------------------------------------------------
def _gating_kernel(x_ref, w_re_ref, b_re_ref, gamma_ref, beta_ref,
                   wq_ref, wk_ref, w2_ref, *, num_heads):
    H = num_heads
    C = wq_ref.shape[0]
    dh = C // H

    x = x_ref[...]
    h = jnp.dot(x, w_re_ref[...], preferred_element_type=jnp.float32)
    h = h + b_re_ref[...]
    h = h * jax.nn.sigmoid(1.702 * h)                      # QuickGELU
    # BatchNorm1d, training-mode: per-call batch stats, biased var, eps=1e-5.
    # Whole batch lives in this single block, so the statistics are exact.
    mean = jnp.mean(h, axis=0, keepdims=True)
    var = jnp.mean((h - mean) ** 2, axis=0, keepdims=True)
    h = (h - mean) * jax.lax.rsqrt(var + 1e-5)
    h = h * gamma_ref[...] + beta_ref[...]
    # q-projection; `scale` is already folded into wq on the host.
    q = jnp.dot(h, wq_ref[...], preferred_element_type=jnp.float32)    # (B, C)

    wk = wk_ref[...]                                                    # (Cin, Cout)
    # Block-diagonal head structure: only the h-th dh-wide column slice of wk
    # interacts with the h-th dh-wide slice of q (runs once per call).
    for head in range(H):
        q_h = q[:, head * dh:(head + 1) * dh]                           # (B, dh)
        wk_h = wk[:, head * dh:(head + 1) * dh]                         # (Cin, dh)
        w2_ref[:, head, :] = jax.lax.dot_general(
            q_h, wk_h, (((1,), (1,)), ((), ())),
            preferred_element_type=jnp.float32)                         # (B, Cin)


# ---------------------------------------------------------------------------
# Stage 2: stream y over (B, N) tiles; fused attention scores + softmax.
# ---------------------------------------------------------------------------
def _attn_softmax_kernel(w2_ref, y_ref, o_ref, *, tile_n):
    ni = pl.program_id(1)

    # attn[b, h, n] = sum_c w2[b, h, c] * y[b, n, c]  (contract-last-dim, batched)
    attn = jax.lax.dot_general(
        w2_ref[...], y_ref[...],
        dimension_numbers=(((2,), (2,)), ((0,), (0,))),
        preferred_element_type=jnp.float32)                 # (tile_b, H, tile_n)

    start = pl.multiple_of(ni * tile_n, tile_n)
    o_ref[:, :, pl.ds(start, tile_n)] = attn

    # Softmax over the full (resident) token axis at the last N step.
    @pl.when(ni == pl.num_programs(1) - 1)
    def _():
        scores = o_ref[...]                                 # (tile_b, H, N) f32
        m = jnp.max(scores, axis=-1, keepdims=True)
        e = jnp.exp(scores - m)
        s = jnp.sum(e, axis=-1, keepdims=True)
        # approximate reciprocal runs on the EUP slot; rows sum to 1 +/- ~1e-3.
        o_ref[...] = e * pl.reciprocal(s, approx=True)


def _pick_tile(dim, preferred):
    for t in preferred:
        if t <= dim and dim % t == 0:
            return t
    return dim


def cross_attention(x, y, params, *, num_heads, matmul_dtype=jnp.float32,
                    tile_b=None, tile_n=None):
    """Returns softmax gates of shape (B, num_heads, 1, N)."""
    B, N, C = y.shape
    assert C % num_heads == 0
    H = num_heads
    head_dim = C // H
    scale = head_dim ** (-0.5)

    # ---- stage 1: gating path (runs once, whole batch -> exact BN stats) ----
    wq_scaled = (params["wq"] * scale).astype(jnp.float32)   # fold scale on host
    w2 = pl.pallas_call(
        functools.partial(_gating_kernel, num_heads=H),
        out_shape=jax.ShapeDtypeStruct((B, H, C), jnp.float32),
    )(x.astype(jnp.float32), params["w_re"], params["b_re"],
      params["gamma"], params["beta"], wq_scaled, params["wk"])

    # ---- stage 2: tiled, double-buffered streaming of y ----
    if tile_n is None:
        tile_n = _pick_tile(N, (512, 256, 128))   # lane-dense tiles when possible
    if tile_b is None:
        tile_b = _pick_tile(B, (8, 4, 2))
    assert B % tile_b == 0 and N % tile_n == 0, (B, tile_b, N, tile_n)

    y_c = y.astype(matmul_dtype)
    w2_c = w2.astype(matmul_dtype)

    itemsize = jnp.dtype(matmul_dtype).itemsize
    # double-buffered y + w2 tiles, resident (tile_b, H, N) output, plus slack;
    # clamp to <= 48 MiB so the budget also fits v7x's 64 MiB physical VMEM.
    vmem_need = (2 * tile_b * tile_n * C * itemsize
                 + 2 * tile_b * H * C * itemsize
                 + 2 * tile_b * H * N * 4
                 + (4 << 20))
    vmem_limit = int(min(max(vmem_need, 32 << 20), 48 << 20))

    cost = pl.CostEstimate(
        flops=2 * B * H * C * N,
        transcendentals=B * H * N,
        bytes_accessed=(B * N * C + B * H * C) * itemsize + B * H * N * 4,
    )

    gates_bhn = pl.pallas_call(
        functools.partial(_attn_softmax_kernel, tile_n=tile_n),
        grid=(B // tile_b, N // tile_n),
        in_specs=[
            pl.BlockSpec((tile_b, H, C), lambda bi, ni: (bi, 0, 0)),        # w2
            pl.BlockSpec((tile_b, tile_n, C), lambda bi, ni: (bi, ni, 0)),  # y
        ],
        out_specs=pl.BlockSpec((tile_b, H, N), lambda bi, ni: (bi, 0, 0)),
        out_shape=jax.ShapeDtypeStruct((B, H, N), jnp.float32),
        compiler_params=pltpu.CompilerParams(
            dimension_semantics=("parallel", "arbitrary"),
            vmem_limit_bytes=vmem_limit),
        cost_estimate=cost,
    )(w2_c, y_c)

    # Only insert the unit query dim (no transpose / data reordering).
    return gates_bhn[:, :, None, :]                          # (B, H, 1, N)


def _reference(x, y, params, num_heads):
    """Pure-JAX reference mirroring the PyTorch forward."""
    B, N, C = y.shape
    dh = C // num_heads
    scale = dh ** (-0.5)
    h = x @ params["w_re"] + params["b_re"]
    h = h * jax.nn.sigmoid(1.702 * h)
    mean = h.mean(0, keepdims=True)
    var = ((h - mean) ** 2).mean(0, keepdims=True)
    h = (h - mean) / jnp.sqrt(var + 1e-5) * params["gamma"] + params["beta"]
    q = h @ params["wq"]
    k = y @ params["wk"]
    qh = q.reshape(B, 1, num_heads, dh).transpose(0, 2, 1, 3)
    kh = k.reshape(B, N, num_heads, dh).transpose(0, 2, 1, 3)
    attn = jnp.einsum("bhqd,bhkd->bhqk", qh, kh) * scale
    return jax.nn.softmax(attn, axis=-1)


if __name__ == "__main__":
    B, N, C, H = 4, 16, 32, 4          # dim=32, num_heads=4 (head_dim=8)

    key = jax.random.PRNGKey(0)
    ks = jax.random.split(key, 8)
    x = jax.random.normal(ks[0], (B, 7 * C), jnp.float32)     # input to linear_re
    y = jax.random.normal(ks[1], (B, N, C), jnp.float32)      # key/value tokens

    params = {
        # Linear(7*dim, dim): weight stored transposed (7C, C), bias (1, C)
        "w_re": 0.05 * jax.random.normal(ks[2], (7 * C, C), jnp.float32),
        "b_re": 0.05 * jax.random.normal(ks[3], (1, C), jnp.float32),
        # BatchNorm1d affine params
        "gamma": 1.0 + 0.1 * jax.random.normal(ks[4], (1, C), jnp.float32),
        "beta": 0.1 * jax.random.normal(ks[5], (1, C), jnp.float32),
        # q_/k_ Linear(dim, dim, bias=False), stored transposed (C, C)
        "wq": 0.05 * jax.random.normal(ks[6], (C, C), jnp.float32),
        "wk": 0.05 * jax.random.normal(ks[7], (C, C), jnp.float32),
    }

    ref = _reference(x, y, params, H)

    # f32 path; tiles chosen so the (B, N) grid really has >1 step per axis,
    # exercising the resident-output + pl.when-gated softmax.
    gates = jax.block_until_ready(
        cross_attention(x, y, params, num_heads=H, tile_b=2, tile_n=8))
    assert gates.shape == (B, H, 1, N), gates.shape
    assert jnp.allclose(gates, ref, rtol=1e-3, atol=1e-3), (
        float(jnp.max(jnp.abs(gates - ref))))

    # bf16 matmul-operand path (what production sizes should use on v5e/v6e/v7x).
    gates_bf16 = jax.block_until_ready(
        cross_attention(x, y, params, num_heads=H,
                        matmul_dtype=jnp.bfloat16, tile_b=2, tile_n=8))
    assert float(jnp.max(jnp.abs(gates_bf16 - ref))) < 2e-2

    print("KERNEL_OK")
</pallas_src>

<mosaic_0001>
module attributes {stable_mosaic.version = 11 : i64} {
  func.func @_gating_kernel(%arg0: memref<4x224xf32, #tpu.memory_space<vmem>>, %arg1: memref<224x32xf32, #tpu.memory_space<vmem>>, %arg2: memref<1x32xf32, #tpu.memory_space<vmem>>, %arg3: memref<1x32xf32, #tpu.memory_space<vmem>>, %arg4: memref<1x32xf32, #tpu.memory_space<vmem>>, %arg5: memref<32x32xf32, #tpu.memory_space<vmem>>, %arg6: memref<32x32xf32, #tpu.memory_space<vmem>>, %arg7: memref<4x4x32xf32, #tpu.memory_space<vmem>>) attributes {dimension_semantics = [], scalar_prefetch = 0 : i64, scratch_operands = 0 : i64, tpu.core_type = #tpu.core_type<tc>} {
    %c0 = arith.constant 0 : index
    %c0_0 = arith.constant 0 : index
    %0 = vector.load %arg0[%c0, %c0_0] : memref<4x224xf32, #tpu.memory_space<vmem>>, vector<4x224xf32>
    %c0_1 = arith.constant 0 : index
    %c0_2 = arith.constant 0 : index
    %1 = vector.load %arg1[%c0_1, %c0_2] : memref<224x32xf32, #tpu.memory_space<vmem>>, vector<224x32xf32>
    %cst = arith.constant dense<0.000000e+00> : vector<4x32xf32>
    %2 = tpu.matmul %0, %1, %cst {dimension_numbers = #tpu.dot_dimension_numbers<[1], [0], [0], [1], [0, 0, 1, 1], [], []>} : vector<4x224xf32>, vector<224x32xf32>, vector<4x32xf32> -> vector<4x32xf32>
    %c0_3 = arith.constant 0 : index
    %c0_4 = arith.constant 0 : index
    %3 = vector.load %arg2[%c0_3, %c0_4] : memref<1x32xf32, #tpu.memory_space<vmem>>, vector<1x32xf32>
    %4 = vector.broadcast %3 : vector<1x32xf32> to vector<4x32xf32>
    %5 = arith.addf %2, %4 : vector<4x32xf32>
    %cst_5 = arith.constant 1.702000e+00 : f32
    %6 = vector.broadcast %cst_5 : f32 to vector<4x32xf32>
    %7 = arith.mulf %6, %5 : vector<4x32xf32>
    %8 = arith.negf %7 : vector<4x32xf32>
    %9 = math.exp %8 : vector<4x32xf32>
    %cst_6 = arith.constant 1.000000e+00 : f32
    %10 = vector.broadcast %cst_6 : f32 to vector<4x32xf32>
    %11 = arith.addf %10, %9 : vector<4x32xf32>
    %12 = arith.divf %10, %11 : vector<4x32xf32>
    %13 = arith.mulf %5, %12 : vector<4x32xf32>
    %cst_7 = arith.constant dense<0.000000e+00> : vector<32xf32>
    %14 = vector.multi_reduction <add>, %13, %cst_7 [0] : vector<4x32xf32> to vector<32xf32>
    %15 = vector.shape_cast %14 : vector<32xf32> to vector<1x32xf32>
    %cst_8 = arith.constant 4.000000e+00 : f32
    %16 = vector.broadcast %cst_8 : f32 to vector<1x32xf32>
    %17 = arith.divf %15, %16 : vector<1x32xf32>
    %18 = vector.broadcast %17 : vector<1x32xf32> to vector<4x32xf32>
    %19 = arith.subf %13, %18 : vector<4x32xf32>
    %20 = arith.mulf %19, %19 : vector<4x32xf32>
    %cst_9 = arith.constant dense<0.000000e+00> : vector<32xf32>
    %21 = vector.multi_reduction <add>, %20, %cst_9 [0] : vector<4x32xf32> to vector<32xf32>
    %22 = vector.shape_cast %21 : vector<32xf32> to vector<1x32xf32>
    %cst_10 = arith.constant 4.000000e+00 : f32
    %23 = vector.broadcast %cst_10 : f32 to vector<1x32xf32>
    %24 = arith.divf %22, %23 : vector<1x32xf32>
    %25 = vector.broadcast %17 : vector<1x32xf32> to vector<4x32xf32>
    %26 = arith.subf %13, %25 : vector<4x32xf32>
    %cst_11 = arith.constant 9.99999974E-6 : f32
    %27 = vector.broadcast %cst_11 : f32 to vector<1x32xf32>
    %28 = arith.addf %24, %27 : vector<1x32xf32>
    %29 = math.rsqrt %28 : vector<1x32xf32>
    %30 = vector.broadcast %29 : vector<1x32xf32> to vector<4x32xf32>
    %31 = arith.mulf %26, %30 : vector<4x32xf32>
    %c0_12 = arith.constant 0 : index
    %c0_13 = arith.constant 0 : index
    %32 = vector.load %arg3[%c0_12, %c0_13] : memref<1x32xf32, #tpu.memory_space<vmem>>, vector<1x32xf32>
    %33 = vector.broadcast %32 : vector<1x32xf32> to vector<4x32xf32>
    %34 = arith.mulf %31, %33 : vector<4x32xf32>
    %c0_14 = arith.constant 0 : index
    %c0_15 = arith.constant 0 : index
    %35 = vector.load %arg4[%c0_14, %c0_15] : memref<1x32xf32, #tpu.memory_space<vmem>>, vector<1x32xf32>
    %36 = vector.broadcast %35 : vector<1x32xf32> to vector<4x32xf32>
    %37 = arith.addf %34, %36 : vector<4x32xf32>
    %c0_16 = arith.constant 0 : index
    %c0_17 = arith.constant 0 : index
    %38 = vector.load %arg5[%c0_16, %c0_17] : memref<32x32xf32, #tpu.memory_space<vmem>>, vector<32x32xf32>
    %cst_18 = arith.constant dense<0.000000e+00> : vector<4x32xf32>
    %39 = tpu.matmul %37, %38, %cst_18 {dimension_numbers = #tpu.dot_dimension_numbers<[1], [0], [0], [1], [0, 0, 1, 1], [], []>} : vector<4x32xf32>, vector<32x32xf32>, vector<4x32xf32> -> vector<4x32xf32>
    %c0_19 = arith.constant 0 : index
    %c0_20 = arith.constant 0 : index
    %40 = vector.load %arg6[%c0_19, %c0_20] : memref<32x32xf32, #tpu.memory_space<vmem>>, vector<32x32xf32>
    %41 = vector.extract_strided_slice %39 {offsets = [0, 0], sizes = [4, 8], strides = [1, 1]} : vector<4x32xf32> to vector<4x8xf32>
    %42 = vector.extract_strided_slice %40 {offsets = [0, 0], sizes = [32, 8], strides = [1, 1]} : vector<32x32xf32> to vector<32x8xf32>
    %cst_21 = arith.constant dense<0.000000e+00> : vector<4x32xf32>
    %43 = tpu.matmul %41, %42, %cst_21 {dimension_numbers = #tpu.dot_dimension_numbers<[1], [1], [0], [0], [0, 0, 1, 0], [], []>} : vector<4x8xf32>, vector<32x8xf32>, vector<4x32xf32> -> vector<4x32xf32>
    %c0_22 = arith.constant 0 : index
    %c0_23 = arith.constant 0 : index
    %c0_24 = arith.constant 0 : index
    %44 = vector.load %arg7[%c0_22, %c0_23, %c0_24] : memref<4x4x32xf32, #tpu.memory_space<vmem>>, vector<4x1x32xf32>
    %45 = vector.shape_cast %44 : vector<4x1x32xf32> to vector<4x32xf32>
    %46 = vector.shape_cast %43 : vector<4x32xf32> to vector<4x1x32xf32>
    tpu.vector_store %arg7[%c0_22, %c0_23, %c0_24], %46 {strides = array<i32>} : memref<4x4x32xf32, #tpu.memory_space<vmem>>, vector<4x1x32xf32>,
    %47 = vector.extract_strided_slice %39 {offsets = [0, 8], sizes = [4, 8], strides = [1, 1]} : vector<4x32xf32> to vector<4x8xf32>
    %48 = vector.extract_strided_slice %40 {offsets = [0, 8], sizes = [32, 8], strides = [1, 1]} : vector<32x32xf32> to vector<32x8xf32>
    %cst_25 = arith.constant dense<0.000000e+00> : vector<4x32xf32>
    %49 = tpu.matmul %47, %48, %cst_25 {dimension_numbers = #tpu.dot_dimension_numbers<[1], [1], [0], [0], [0, 0, 1, 0], [], []>} : vector<4x8xf32>, vector<32x8xf32>, vector<4x32xf32> -> vector<4x32xf32>
    %c0_26 = arith.constant 0 : index
    %c1 = arith.constant 1 : index
    %c0_27 = arith.constant 0 : index
    %50 = vector.load %arg7[%c0_26, %c1, %c0_27] : memref<4x4x32xf32, #tpu.memory_space<vmem>>, vector<4x1x32xf32>
    %51 = vector.shape_cast %50 : vector<4x1x32xf32> to vector<4x32xf32>
    %52 = vector.shape_cast %49 : vector<4x32xf32> to vector<4x1x32xf32>
    tpu.vector_store %arg7[%c0_26, %c1, %c0_27], %52 {strides = array<i32>} : memref<4x4x32xf32, #tpu.memory_space<vmem>>, vector<4x1x32xf32>,
    %53 = vector.extract_strided_slice %39 {offsets = [0, 16], sizes = [4, 8], strides = [1, 1]} : vector<4x32xf32> to vector<4x8xf32>
    %54 = vector.extract_strided_slice %40 {offsets = [0, 16], sizes = [32, 8], strides = [1, 1]} : vector<32x32xf32> to vector<32x8xf32>
    %cst_28 = arith.constant dense<0.000000e+00> : vector<4x32xf32>
    %55 = tpu.matmul %53, %54, %cst_28 {dimension_numbers = #tpu.dot_dimension_numbers<[1], [1], [0], [0], [0, 0, 1, 0], [], []>} : vector<4x8xf32>, vector<32x8xf32>, vector<4x32xf32> -> vector<4x32xf32>
    %c0_29 = arith.constant 0 : index
    %c2 = arith.constant 2 : index
    %c0_30 = arith.constant 0 : index
    %56 = vector.load %arg7[%c0_29, %c2, %c0_30] : memref<4x4x32xf32, #tpu.memory_space<vmem>>, vector<4x1x32xf32>
    %57 = vector.shape_cast %56 : vector<4x1x32xf32> to vector<4x32xf32>
    %58 = vector.shape_cast %55 : vector<4x32xf32> to vector<4x1x32xf32>
    tpu.vector_store %arg7[%c0_29, %c2, %c0_30], %58 {strides = array<i32>} : memref<4x4x32xf32, #tpu.memory_space<vmem>>, vector<4x1x32xf32>,
    %59 = vector.extract_strided_slice %39 {offsets = [0, 24], sizes = [4, 8], strides = [1, 1]} : vector<4x32xf32> to vector<4x8xf32>
    %60 = vector.extract_strided_slice %40 {offsets = [0, 24], sizes = [32, 8], strides = [1, 1]} : vector<32x32xf32> to vector<32x8xf32>
    %cst_31 = arith.constant dense<0.000000e+00> : vector<4x32xf32>
    %61 = tpu.matmul %59, %60, %cst_31 {dimension_numbers = #tpu.dot_dimension_numbers<[1], [1], [0], [0], [0, 0, 1, 0], [], []>} : vector<4x8xf32>, vector<32x8xf32>, vector<4x32xf32> -> vector<4x32xf32>
    %c0_32 = arith.constant 0 : index
    %c3 = arith.constant 3 : index
    %c0_33 = arith.constant 0 : index
    %62 = vector.load %arg7[%c0_32, %c3, %c0_33] : memref<4x4x32xf32, #tpu.memory_space<vmem>>, vector<4x1x32xf32>
    %63 = vector.shape_cast %62 : vector<4x1x32xf32> to vector<4x32xf32>
    %64 = vector.shape_cast %61 : vector<4x32xf32> to vector<4x1x32xf32>
    tpu.vector_store %arg7[%c0_32, %c3, %c0_33], %64 {strides = array<i32>} : memref<4x4x32xf32, #tpu.memory_space<vmem>>, vector<4x1x32xf32>,
    return
  }
}

</mosaic_0001>

<llo_original>
// kernel: tpu_custom_call.1
$region0: #{tpu_custom_call.1}
  #allocation0 [shape = 'u32[]', space=smem, size = 0x4, offset = 0x4, fixed_abs, tag = 'smem constant byte address 0x4 - core index']
  #allocation1 [shape = 'u32[144,128]{1,0:T(1,128)}', space=vmem, size = 0x12000, scoped, tag = 'internal scratch']
  %s0 = inlined_call_operand.vmem [shape: f32[4,224], index: 0, kind: input, shape index: {}]
  %s1 = inlined_call_operand.vmem [shape: f32[224,32], index: 1, kind: input, shape index: {}]
  %s2 = inlined_call_operand.vmem [shape: f32[1,32], index: 2, kind: input, shape index: {}]
  %s3 = inlined_call_operand.vmem [shape: f32[1,32], index: 3, kind: input, shape index: {}]
  %s4 = inlined_call_operand.vmem [shape: f32[1,32], index: 4, kind: input, shape index: {}]
  %s5 = inlined_call_operand.vmem [shape: f32[32,32], index: 5, kind: input, shape index: {}]
  %s6 = inlined_call_operand.vmem [shape: f32[32,32], index: 6, kind: input, shape index: {}]
  %s7 = inlined_call_operand.hbm [shape: f32[4,4,32], index: 7, kind: output, shape index: {}]
  %s8 = sld [smem:[#allocation0]]
  $region38: #{tpu_custom_call.1} parent=0
    _
  %s10 = ssub.s32 1, %s8
  %s11 = scalar_select 0, %s10, %s8
  $region1: #{tpu_custom_call.1} parent=0
    #allocation2 [shape = 'u8[8192]{0}', space=vmem, size = 0x2000, scoped, tag = 'output window, operand 0, single buffered']
    #allocation3 [shape = 's32[1]{0}', space=sflag, size = 0x4, scoped, tag = 'scoped memory for tpu_custom_call.1']
    %12 = vsyncpa [#allocation3], 0
    // Predicated region
    $region2: #{tpu_custom_call.1} parent=1 // pred_check
      _
    $region3: #{tpu_custom_call.1} parent=1 // pred_check_branch
      %14 = sbr.rel (0) target = $region5
    $region4: #{tpu_custom_call.1} parent=1 // pred_region
      _
    $region5: #{tpu_custom_call.1} parent=1 // pred_fallthru
      _
    // Predicated region
    $region6: #{tpu_custom_call.1} parent=1 // pred_check
      _
    $region7: #{tpu_custom_call.1} parent=1 // pred_check_branch
      %16 = sbr.rel (0) target = $region9
    $region8: #{tpu_custom_call.1} parent=1 // pred_region
      _
    $region9: #{tpu_custom_call.1} parent=1 // pred_fallthru
      _
    // Predicated region
    $region10: #{tpu_custom_call.1} parent=1 // pred_check
      _
    $region11: #{tpu_custom_call.1} parent=1 // pred_check_branch
      %18 = sbr.rel (0) target = $region13
    $region12: #{tpu_custom_call.1} parent=1 // pred_region
      _
    $region13: #{tpu_custom_call.1} parent=1 // pred_fallthru
      _
    // Predicated region
    $region14: #{tpu_custom_call.1} parent=1 // pred_check
      _
    $region15: #{tpu_custom_call.1} parent=1 // pred_check_branch
      %20 = sbr.rel (0) target = $region17
    $region16: #{tpu_custom_call.1} parent=1 // pred_region
      _
    $region17: #{tpu_custom_call.1} parent=1 // pred_fallthru
      _
    // Predicated region
    $region18: #{tpu_custom_call.1} parent=1 // pred_check
      _
    $region19: #{tpu_custom_call.1} parent=1 // pred_check_branch
      %22 = sbr.rel (0) target = $region21
    $region20: #{tpu_custom_call.1} parent=1 // pred_region
      _
    $region21: #{tpu_custom_call.1} parent=1 // pred_fallthru
      _
    // Predicated region
    $region22: #{tpu_custom_call.1} parent=1 // pred_check
      _
    $region23: #{tpu_custom_call.1} parent=1 // pred_check_branch
      %24 = sbr.rel (0) target = $region25
    $region24: #{tpu_custom_call.1} parent=1 // pred_region
      _
    $region25: #{tpu_custom_call.1} parent=1 // pred_fallthru
      _
    // Predicated region
    $region26: #{tpu_custom_call.1} parent=1 // pred_check
      _
    $region27: #{tpu_custom_call.1} parent=1 // pred_check_branch
      %26 = sbr.rel (0) target = $region29
    $region28: #{tpu_custom_call.1} parent=1 // pred_region
      _
    $region29: #{tpu_custom_call.1} parent=1 // pred_fallthru
      _
    %v27 = vld [vmem:[%s0] sm:$0xff]
    %v28 = vld [vmem:[%s1] sm:$0xff]
    %v29 = vld [vmem:[%s1 + $0x8] sm:$0xff]
    %v30 = vld [vmem:[%s1 + $0x10] sm:$0xff]
    %v31 = vld [vmem:[%s1 + $0x18] sm:$0xff]
    %v32 = vld [vmem:[%s1 + $0x20] sm:$0xff]
    %v33 = vld [vmem:[%s1 + $0x28] sm:$0xff]
    %v34 = vld [vmem:[%s1 + $0x30] sm:$0xff]
    %v35 = vld [vmem:[%s1 + $0x38] sm:$0xff]
    %v36 = vld [vmem:[%s1 + $0x40] sm:$0xff]
    %v37 = vld [vmem:[%s1 + $0x48] sm:$0xff]
    %v38 = vld [vmem:[%s1 + $0x50] sm:$0xff]
    %v39 = vld [vmem:[%s1 + $0x58] sm:$0xff]
    %v40 = vld [vmem:[%s1 + $0x60] sm:$0xff]
    %v41 = vld [vmem:[%s1 + $0x68] sm:$0xff]
    %v42 = vld [vmem:[%s1 + $0x70] sm:$0xff]
    %v43 = vld [vmem:[%s1 + $0x78] sm:$0xff]
    %v44 = vld [vmem:[%s1 + $0x80] sm:$0xff]
    %v45 = vld [vmem:[%s1 + $0x88] sm:$0xff]
    %v46 = vld [vmem:[%s1 + $0x90] sm:$0xff]
    %v47 = vld [vmem:[%s1 + $0x98] sm:$0xff]
    %v48 = vld [vmem:[%s1 + $0xa0] sm:$0xff]
    %v49 = vld [vmem:[%s1 + $0xa8] sm:$0xff]
    %v50 = vld [vmem:[%s1 + $0xb0] sm:$0xff]
    %v51 = vld [vmem:[%s1 + $0xb8] sm:$0xff]
    %v52 = vld [vmem:[%s1 + $0xc0] sm:$0xff]
    %v53 = vld [vmem:[%s1 + $0xc8] sm:$0xff]
    %v54 = vld [vmem:[%s1 + $0xd0] sm:$0xff]
    %v55 = vld [vmem:[%s1 + $0xd8] sm:$0xff]
    %v56 = vld [vmem:[%s2] sm:$0x1]
    %v58 = vlaneseq
    %v59 = vshrl.u32 %v58, 7
    %v60 = vsub.s32 0, %v59
    %v61 = vrot.slane %v56, %v60
    %v64 = vcombine.high %v27, %v27
    %vm65 = vcmask 785408
    %v66 = vsel %vm65, %v64, 0
    %68 = vmatprep.subr.mxu0 0.0
    %69 = vmatpush1.msra.mxu0 %v28
    %70 = vmatprep.subr.mxu0 0.0
    %71 = vmatpush1.msra.mxu0 %v29
    %72 = vmatprep.subr.mxu0 0.0
    %73 = vmatpush1.msra.mxu0 %v30
    %74 = vmatprep.subr.mxu0 0.0
    %75 = vmatpush1.msra.mxu0 %v31
    %76 = vmatprep.subr.mxu0 0.0
    %77 = vmatpush1.msra.mxu0 %v32
    %78 = vmatprep.subr.mxu0 0.0
    %79 = vmatpush1.msra.mxu0 %v33
    %80 = vmatprep.subr.mxu0 0.0
    %81 = vmatpush1.msra.mxu0 %v34
    %82 = vmatprep.subr.mxu0 0.0
    %83 = vmatpush1.msra.mxu0 %v35
    %84 = vmatprep.subr.mxu0 0.0
    %85 = vmatpush1.msra.mxu0 %v36
    %86 = vmatprep.subr.mxu0 0.0
    %87 = vmatpush1.msra.mxu0 %v37
    %88 = vmatprep.subr.mxu0 0.0
    %89 = vmatpush1.msra.mxu0 %v38
    %90 = vmatprep.subr.mxu0 0.0
    %91 = vmatpush1.msra.mxu0 %v39
    %92 = vmatprep.subr.mxu0 0.0
    %93 = vmatpush1.msra.mxu0 %v40
    %94 = vmatprep.subr.mxu0 0.0
    %95 = vmatpush1.msra.mxu0 %v41
    %96 = vmatprep.subr.mxu0 0.0
    %97 = vmatpush1.msra.mxu0 %v42
    %98 = vmatprep.subr.mxu0 0.0
    %99 = vmatpush1.msra.mxu0 %v43
    %100 = vmatprep.subr.mxu0 0.0
    %101 = vmatpush1.msra.mxu0 %v44
    %102 = vmatprep.subr.mxu0 0.0
    %103 = vmatpush1.msra.mxu0 %v45
    %104 = vmatprep.subr.mxu0 0.0
    %105 = vmatpush1.msra.mxu0 %v46
    %106 = vmatprep.subr.mxu0 0.0
    %107 = vmatpush1.msra.mxu0 %v47
    %108 = vmatprep.subr.mxu0 0.0
    %109 = vmatpush1.msra.mxu0 %v48
    %110 = vmatprep.subr.mxu0 0.0
    %111 = vmatpush1.msra.mxu0 %v49
    %112 = vmatprep.subr.mxu0 0.0
    %113 = vmatpush1.msra.mxu0 %v50
    %114 = vmatprep.subr.mxu0 0.0
    %115 = vmatpush1.msra.mxu0 %v51
    %116 = vmatprep.subr.mxu0 0.0
    %117 = vmatpush1.msra.mxu0 %v52
    %118 = vmatprep.subr.mxu0 0.0
    %119 = vmatpush1.msra.mxu0 %v53
    %120 = vmatprep.subr.mxu0 0.0
    %121 = vmatpush1.msra.mxu0 %v54
    %122 = vmatprep.subr.mxu0 0.0
    %123 = vmatpush1.msra.mxu0 %v55
    %124 = vmatprep.subr.mxu0 0.0
    %125 = vmatpush1.msra.mxu0 0.0
    %126 = vmatprep.subr.mxu0 0.0
    %127 = vmatpush1.msra.mxu0 0.0
    %128 = vmatprep.subr.mxu0 0.0
    %129 = vmatpush1.msra.mxu0 0.0
    %130 = vmatprep.subr.mxu0 0.0
    %131 = vmatpush1.msra.mxu0 0.0
    %132 = vmatprep.mubr.f32.mxu0 %v66
    %133 = vmatmul.mubr.f32.gmra.mrb[0].mxu0 %v27
    %v134 = vpop.f32.mrb[0].mxu0
    %v135 = vadd.f32 %v61, %v134
    %v136 = vpop.f32.mrb[0].mxu0
    %137 = vdwg.mxu0
    %v138 = vmul.f32 %v135, 1.702
    %v139 = vxor.u32 %v138, 2147483648
    %v140 = vmul.f32 %v139, 1.442695
    %v141 = vpow.pop %v140
    %v142 = vadd.f32 %v141, 1.0
    %v143 = vrcp.pop %v142
    %v144 = vmul.f32 1.0, %v143
    %v145 = vmul.f32 %v135, %v144
    %vm146 = vcmask 257024
    %v147 = vsel %vm146, %v145, 0.0
    %v148 = vrot.slane %v147, 4
    %v149 = vadd.f32 %v147, %v148
    %v150 = vrot.slane %v149, 2
    %v151 = vadd.f32 %v149, %v150
    %v152 = vrot.slane %v151, 1
    %v153 = vadd.f32 %v151, %v152
    %v154 = vrcp.pop 4.0
    %v155 = vmul.f32 %v153, %v154
    %v156 = vsub.f32 %v145, %v155
    %v157 = vmul.f32 %v156, %v156
    %v158 = vsel %vm146, %v157, 0.0
    %v159 = vrot.slane %v158, 4
    %v160 = vadd.f32 %v158, %v159
    %v161 = vrot.slane %v160, 2
    %v162 = vadd.f32 %v160, %v161
    %v163 = vrot.slane %v162, 1
    %v164 = vadd.f32 %v162, %v163
    %v165 = vmul.f32 %v164, %v154
    %v166 = vadd.f32 %v165, 1e-05
    %v167 = vrsqrt.pop %v166
    %v168 = vmul.f32 %v156, %v167
    %v169 = vld [vmem:[%s3] sm:$0x1]
    %v171 = vlaneseq
    %v172 = vshrl.u32 %v171, 7
    %v173 = vsub.s32 0, %v172
    %v174 = vrot.slane %v169, %v173
    %v176 = vmul.f32 %v168, %v174
    %v177 = vld [vmem:[%s4] sm:$0x1]
    %v179 = vlaneseq
    %v180 = vshrl.u32 %v179, 7
    %v181 = vsub.s32 0, %v180
    %v182 = vrot.slane %v177, %v181
    %v184 = vadd.f32 %v176, %v182
    %v185 = vld [vmem:[%s5] sm:$0xff]
    %v186 = vld [vmem:[%s5 + $0x8] sm:$0xff]
    %v187 = vld [vmem:[%s5 + $0x10] sm:$0xff]
    %v188 = vld [vmem:[%s5 + $0x18] sm:$0xff]
    %vm189 = vcmask 261120
    %v191 = vsel %vm189, %v184, 0
    %193 = vmatprep.subr.mxu0 0.0
    %194 = vmatpush1.msra.mxu0 %v185
    %195 = vmatprep.subr.mxu0 0.0
    %196 = vmatpush1.msra.mxu0 %v186
    %197 = vmatprep.subr.mxu0 0.0
    %198 = vmatpush1.msra.mxu0 %v187
    %199 = vmatprep.subr.mxu0 0.0
    %200 = vmatpush1.msra.mxu0 %v188
    %201 = vmatprep.subr.mxu0 0.0
    %202 = vmatpush1.msra.mxu0 0.0
    %203 = vmatprep.subr.mxu0 0.0
    %204 = vmatpush1.msra.mxu0 0.0
    %205 = vmatprep.subr.mxu0 0.0
    %206 = vmatpush1.msra.mxu0 0.0
    %207 = vmatprep.subr.mxu0 0.0
    %208 = vmatpush1.msra.mxu0 0.0
    %209 = vmatprep.subr.mxu0 0.0
    %210 = vmatpush1.msra.mxu0 0.0
    %211 = vmatprep.subr.mxu0 0.0
    %212 = vmatpush1.msra.mxu0 0.0
    %213 = vmatprep.subr.mxu0 0.0
    %214 = vmatpush1.msra.mxu0 0.0
    %215 = vmatprep.subr.mxu0 0.0
    %216 = vmatpush1.msra.mxu0 0.0
    %217 = vmatprep.subr.mxu0 0.0
    %218 = vmatpush1.msra.mxu0 0.0
    %219 = vmatprep.subr.mxu0 0.0
    %220 = vmatpush1.msra.mxu0 0.0
    %221 = vmatprep.subr.mxu0 0.0
    %222 = vmatpush1.msra.mxu0 0.0
    %223 = vmatprep.subr.mxu0 0.0
    %224 = vmatpush1.msra.mxu0 0.0
    %225 = vmatprep.subr.mxu0 0.0
    %226 = vmatpush1.msra.mxu0 0.0
    %227 = vmatprep.subr.mxu0 0.0
    %228 = vmatpush1.msra.mxu0 0.0
    %229 = vmatprep.subr.mxu0 0.0
    %230 = vmatpush1.msra.mxu0 0.0
    %231 = vmatprep.subr.mxu0 0.0
    %232 = vmatpush1.msra.mxu0 0.0
    %233 = vmatprep.subr.mxu0 0.0
    %234 = vmatpush1.msra.mxu0 0.0
    %235 = vmatprep.subr.mxu0 0.0
    %236 = vmatpush1.msra.mxu0 0.0
    %237 = vmatprep.subr.mxu0 0.0
    %238 = vmatpush1.msra.mxu0 0.0
    %239 = vmatprep.subr.mxu0 0.0
    %240 = vmatpush1.msra.mxu0 0.0
    %241 = vmatprep.subr.mxu0 0.0
    %242 = vmatpush1.msra.mxu0 0.0
    %243 = vmatprep.subr.mxu0 0.0
    %244 = vmatpush1.msra.mxu0 0.0
    %245 = vmatprep.subr.mxu0 0.0
    %246 = vmatpush1.msra.mxu0 0.0
    %247 = vmatprep.subr.mxu0 0.0
    %248 = vmatpush1.msra.mxu0 0.0
    %249 = vmatprep.subr.mxu0 0.0
    %250 = vmatpush1.msra.mxu0 0.0
    %251 = vmatprep.subr.mxu0 0.0
    %252 = vmatpush1.msra.mxu0 0.0
    %253 = vmatprep.subr.mxu0 0.0
    %254 = vmatpush1.msra.mxu0 0.0
    %255 = vmatprep.subr.mxu0 0.0
    %256 = vmatpush1.msra.mxu0 0.0
    %257 = vmatprep.mubr.f32.mxu0 0.0
    %258 = vmatmul.mubr.f32.gmra.mrb[0].mxu0 %v191
    %v259 = vpop.f32.mrb[0].mxu0
    %v260 = vadd.f32 0.0, %v259
    %v261 = vpop.f32.mrb[0].mxu0
    %262 = vdwg.mxu0
    %v263 = vld [vmem:[%s6] sm:$0xff]
    %v264 = vld [vmem:[%s6 + $0x8] sm:$0xff]
    %v265 = vld [vmem:[%s6 + $0x10] sm:$0xff]
    %v266 = vld [vmem:[%s6 + $0x18] sm:$0xff]
    %vm267 = vcmask 64512
    %v269 = vsel %vm267, %v260, 0
    %v272 = vsel %vm267, %v263, 0
    %v275 = vsel %vm267, %v264, 0
    %v278 = vsel %vm267, %v265, 0
    %v281 = vsel %vm267, %v266, 0
    %283 = vmatprep.subr.mxu0 0.0
    %284 = vmatpush1.xpose.msra.mxu0 %v272
    %285 = vmatprep.subr.mxu0 0.0
    %286 = vmatpush1.xpose.msra.mxu0 %v275
    %287 = vmatprep.subr.mxu0 0.0
    %288 = vmatpush1.xpose.msra.mxu0 %v278
    %289 = vmatprep.subr.mxu0 0.0
    %290 = vmatpush1.xpose.msra.mxu0 %v281
    %291 = vmatprep.subr.mxu0 0.0
    %292 = vmatpush1.xpose.msra.mxu0 0.0
    %293 = vmatprep.subr.mxu0 0.0
    %294 = vmatpush1.xpose.msra.mxu0 0.0
    %295 = vmatprep.subr.mxu0 0.0
    %296 = vmatpush1.xpose.msra.mxu0 0.0
    %297 = vmatprep.subr.mxu0 0.0
    %298 = vmatpush1.xpose.msra.mxu0 0.0
    %299 = vmatprep.subr.mxu0 0.0
    %300 = vmatpush1.xpose.msra.mxu0 0.0
    %301 = vmatprep.subr.mxu0 0.0
    %302 = vmatpush1.xpose.msra.mxu0 0.0
    %303 = vmatprep.subr.mxu0 0.0
    %304 = vmatpush1.xpose.msra.mxu0 0.0
    %305 = vmatprep.subr.mxu0 0.0
    %306 = vmatpush1.xpose.msra.mxu0 0.0
    %307 = vmatprep.subr.mxu0 0.0
    %308 = vmatpush1.xpose.msra.mxu0 0.0
    %309 = vmatprep.subr.mxu0 0.0
    %310 = vmatpush1.xpose.msra.mxu0 0.0
    %311 = vmatprep.subr.mxu0 0.0
    %312 = vmatpush1.xpose.msra.mxu0 0.0
    %313 = vmatprep.subr.mxu0 0.0
    %314 = vmatpush1.xpose.msra.mxu0 0.0
    %315 = vmatprep.subr.mxu0 0.0
    %316 = vmatpush1.xpose.msra.mxu0 0.0
    %317 = vmatprep.subr.mxu0 0.0
    %318 = vmatpush1.xpose.msra.mxu0 0.0
    %319 = vmatprep.subr.mxu0 0.0
    %320 = vmatpush1.xpose.msra.mxu0 0.0
    %321 = vmatprep.subr.mxu0 0.0
    %322 = vmatpush1.xpose.msra.mxu0 0.0
    %323 = vmatprep.subr.mxu0 0.0
    %324 = vmatpush1.xpose.msra.mxu0 0.0
    %325 = vmatprep.subr.mxu0 0.0
    %326 = vmatpush1.xpose.msra.mxu0 0.0
    %327 = vmatprep.subr.mxu0 0.0
    %328 = vmatpush1.xpose.msra.mxu0 0.0
    %329 = vmatprep.subr.mxu0 0.0
    %330 = vmatpush1.xpose.msra.mxu0 0.0
    %331 = vmatprep.subr.mxu0 0.0
    %332 = vmatpush1.xpose.msra.mxu0 0.0
    %333 = vmatprep.subr.mxu0 0.0
    %334 = vmatpush1.xpose.msra.mxu0 0.0
    %335 = vmatprep.subr.mxu0 0.0
    %336 = vmatpush1.xpose.msra.mxu0 0.0
    %337 = vmatprep.subr.mxu0 0.0
    %338 = vmatpush1.xpose.msra.mxu0 0.0
    %339 = vmatprep.subr.mxu0 0.0
    %340 = vmatpush1.xpose.msra.mxu0 0.0
    %341 = vmatprep.subr.mxu0 0.0
    %342 = vmatpush1.xpose.msra.mxu0 0.0
    %343 = vmatprep.subr.mxu0 0.0
    %344 = vmatpush1.xpose.msra.mxu0 0.0
    %345 = vmatprep.subr.mxu0 0.0
    %346 = vmatpush1.xpose.msra.mxu0 0.0
    %347 = vmatprep.mubr.f32.mxu0 0.0
    %348 = vmatmul.mubr.f32.gmra.mrb[0].mxu0 %v269
    %v349 = vpop.f32.mrb[0].mxu0
    %v350 = vadd.f32 0.0, %v349
    %v351 = vpop.f32.mrb[0].mxu0
    %352 = vdwg.mxu0
    %v355 = vunpack.c.l.s4 1966171168
    %v356 = vunpack.c.0.s8 %v355
    %v357 = vlaneseq
    %v358 = vshrl.u32 %v357, 7
    %v359 = vsub.s32 %v356, %v358
    %v360 = vrot.slane %v350, %v359
    %v361 = vcombine.high %v360, %v360
    %v363 = vunpack.c.l.s4 1966171168
    %v364 = vunpack.c.0.s8 %v363
    %v365 = vlaneseq
    %v366 = vshrl.u32 %v365, 7
    %v367 = vsub.s32 %v364, %v366
    %v368 = vrot.slane %v360, %v367
    %v370 = vunpack.c.l.s4 1966171168
    %v371 = vunpack.c.0.s8 %v370
    %v372 = vlaneseq
    %v373 = vshrl.u32 %v372, 7
    %v374 = vsub.s32 %v371, %v373
    %v375 = vrot.slane %v361, %v374
    %v376 = vcombine.high %v368, %v368
    %v377 = vcombine.high %v375, %v375
    %vm382 = vcmask 253952
    %383 = vst.msk [vmem:[#allocation2] sm:$0x1] %vm382, %v368
    %384 = vst.msk [vmem:[#allocation2 + $0x4] sm:$0x1] %vm382, %v375
    %385 = vst.msk [vmem:[#allocation2 + $0x8] sm:$0x1] %vm382, %v376
    %386 = vst.msk [vmem:[#allocation2 + $0xc] sm:$0x1] %vm382, %v377
    %387 = vrot.lane.b32.xlu0 %v260, 120
    %v388 = vpop.permute.xlu0 %387
    %389 = vrot.lane.b32.xlu0 %v263, 120
    %v390 = vpop.permute.xlu0 %389
    %391 = vrot.lane.b32.xlu0 %v264, 120
    %v392 = vpop.permute.xlu0 %391
    %393 = vrot.lane.b32.xlu0 %v265, 120
    %v394 = vpop.permute.xlu0 %393
    %395 = vrot.lane.b32.xlu0 %v266, 120
    %v396 = vpop.permute.xlu0 %395
    %v397 = vsel %vm267, %v388, 0
    %v399 = vsel %vm267, %v390, 0
    %v401 = vsel %vm267, %v392, 0
    %v403 = vsel %vm267, %v394, 0
    %v405 = vsel %vm267, %v396, 0
    %407 = vmatprep.subr.mxu0 0.0
    %408 = vmatpush1.xpose.msra.mxu0 %v399
    %409 = vmatprep.subr.mxu0 0.0
    %410 = vmatpush1.xpose.msra.mxu0 %v401
    %411 = vmatprep.subr.mxu0 0.0
    %412 = vmatpush1.xpose.msra.mxu0 %v403
    %413 = vmatprep.subr.mxu0 0.0
    %414 = vmatpush1.xpose.msra.mxu0 %v405
    %415 = vmatprep.subr.mxu0 0.0
    %416 = vmatpush1.xpose.msra.mxu0 0.0
    %417 = vmatprep.subr.mxu0 0.0
    %418 = vmatpush1.xpose.msra.mxu0 0.0
    %419 = vmatprep.subr.mxu0 0.0
    %420 = vmatpush1.xpose.msra.mxu0 0.0
    %421 = vmatprep.subr.mxu0 0.0
    %422 = vmatpush1.xpose.msra.mxu0 0.0
    %423 = vmatprep.subr.mxu0 0.0
    %424 = vmatpush1.xpose.msra.mxu0 0.0
    %425 = vmatprep.subr.mxu0 0.0
    %426 = vmatpush1.xpose.msra.mxu0 0.0
    %427 = vmatprep.subr.mxu0 0.0
    %428 = vmatpush1.xpose.msra.mxu0 0.0
    %429 = vmatprep.subr.mxu0 0.0
    %430 = vmatpush1.xpose.msra.mxu0 0.0
    %431 = vmatprep.subr.mxu0 0.0
    %432 = vmatpush1.xpose.msra.mxu0 0.0
    %433 = vmatprep.subr.mxu0 0.0
    %434 = vmatpush1.xpose.msra.mxu0 0.0
    %435 = vmatprep.subr.mxu0 0.0
    %436 = vmatpush1.xpose.msra.mxu0 0.0
    %437 = vmatprep.subr.mxu0 0.0
    %438 = vmatpush1.xpose.msra.mxu0 0.0
    %439 = vmatprep.subr.mxu0 0.0
    %440 = vmatpush1.xpose.msra.mxu0 0.0
    %441 = vmatprep.subr.mxu0 0.0
    %442 = vmatpush1.xpose.msra.mxu0 0.0
    %443 = vmatprep.subr.mxu0 0.0
    %444 = vmatpush1.xpose.msra.mxu0 0.0
    %445 = vmatprep.subr.mxu0 0.0
    %446 = vmatpush1.xpose.msra.mxu0 0.0
    %447 = vmatprep.subr.mxu0 0.0
    %448 = vmatpush1.xpose.msra.mxu0 0.0
    %449 = vmatprep.subr.mxu0 0.0
    %450 = vmatpush1.xpose.msra.mxu0 0.0
    %451 = vmatprep.subr.mxu0 0.0
    %452 = vmatpush1.xpose.msra.mxu0 0.0
    %453 = vmatprep.subr.mxu0 0.0
    %454 = vmatpush1.xpose.msra.mxu0 0.0
    %455 = vmatprep.subr.mxu0 0.0
    %456 = vmatpush1.xpose.msra.mxu0 0.0
    %457 = vmatprep.subr.mxu0 0.0
    %458 = vmatpush1.xpose.msra.mxu0 0.0
    %459 = vmatprep.subr.mxu0 0.0
    %460 = vmatpush1.xpose.msra.mxu0 0.0
    %461 = vmatprep.subr.mxu0 0.0
    %462 = vmatpush1.xpose.msra.mxu0 0.0
    %463 = vmatprep.subr.mxu0 0.0
    %464 = vmatpush1.xpose.msra.mxu0 0.0
    %465 = vmatprep.subr.mxu0 0.0
    %466 = vmatpush1.xpose.msra.mxu0 0.0
    %467 = vmatprep.subr.mxu0 0.0
    %468 = vmatpush1.xpose.msra.mxu0 0.0
    %469 = vmatprep.subr.mxu0 0.0
    %470 = vmatpush1.xpose.msra.mxu0 0.0
    %471 = vmatprep.mubr.f32.mxu0 0.0
    %472 = vmatmul.mubr.f32.gmra.mrb[0].mxu0 %v397
    %v473 = vpop.f32.mrb[0].mxu0
    %v474 = vadd.f32 0.0, %v473
    %v475 = vpop.f32.mrb[0].mxu0
    %476 = vdwg.mxu0
    %v479 = vunpack.c.l.s4 1966171168
    %v480 = vunpack.c.0.s8 %v479
    %v481 = vlaneseq
    %v482 = vshrl.u32 %v481, 7
    %v483 = vsub.s32 %v480, %v482
    %v484 = vrot.slane %v474, %v483
    %v485 = vcombine.high %v484, %v484
    %v487 = vunpack.c.l.s4 1966171168
    %v488 = vunpack.c.0.s8 %v487
    %v489 = vlaneseq
    %v490 = vshrl.u32 %v489, 7
    %v491 = vsub.s32 %v488, %v490
    %v492 = vrot.slane %v484, %v491
    %v494 = vunpack.c.l.s4 1966171168
    %v495 = vunpack.c.0.s8 %v494
    %v496 = vlaneseq
    %v497 = vshrl.u32 %v496, 7
    %v498 = vsub.s32 %v495, %v497
    %v499 = vrot.slane %v485, %v498
    %v500 = vcombine.high %v492, %v492
    %v501 = vcombine.high %v499, %v499
    %506 = vst.msk [vmem:[#allocation2 + $0x1] sm:$0x1] %vm382, %v492
    %507 = vst.msk [vmem:[#allocation2 + $0x5] sm:$0x1] %vm382, %v499
    %508 = vst.msk [vmem:[#allocation2 + $0x9] sm:$0x1] %vm382, %v500
    %509 = vst.msk [vmem:[#allocation2 + $0xd] sm:$0x1] %vm382, %v501
    %510 = vrot.lane.b32.xlu0 %v260, 112
    %v511 = vpop.permute.xlu0 %510
    %512 = vrot.lane.b32.xlu0 %v263, 112
    %v513 = vpop.permute.xlu0 %512
    %514 = vrot.lane.b32.xlu0 %v264, 112
    %v515 = vpop.permute.xlu0 %514
    %516 = vrot.lane.b32.xlu0 %v265, 112
    %v517 = vpop.permute.xlu0 %516
    %518 = vrot.lane.b32.xlu0 %v266, 112
    %v519 = vpop.permute.xlu0 %518
    %v520 = vsel %vm267, %v511, 0
    %v522 = vsel %vm267, %v513, 0
    %v524 = vsel %vm267, %v515, 0
    %v526 = vsel %vm267, %v517, 0
    %v528 = vsel %vm267, %v519, 0
    %530 = vmatprep.subr.mxu0 0.0
    %531 = vmatpush1.xpose.msra.mxu0 %v522
    %532 = vmatprep.subr.mxu0 0.0
    %533 = vmatpush1.xpose.msra.mxu0 %v524
    %534 = vmatprep.subr.mxu0 0.0
    %535 = vmatpush1.xpose.msra.mxu0 %v526
    %536 = vmatprep.subr.mxu0 0.0
    %537 = vmatpush1.xpose.msra.mxu0 %v528
    %538 = vmatprep.subr.mxu0 0.0
    %539 = vmatpush1.xpose.msra.mxu0 0.0
    %540 = vmatprep.subr.mxu0 0.0
    %541 = vmatpush1.xpose.msra.mxu0 0.0
    %542 = vmatprep.subr.mxu0 0.0
    %543 = vmatpush1.xpose.msra.mxu0 0.0
    %544 = vmatprep.subr.mxu0 0.0
    %545 = vmatpush1.xpose.msra.mxu0 0.0
    %546 = vmatprep.subr.mxu0 0.0
    %547 = vmatpush1.xpose.msra.mxu0 0.0
    %548 = vmatprep.subr.mxu0 0.0
    %549 = vmatpush1.xpose.msra.mxu0 0.0
    %550 = vmatprep.subr.mxu0 0.0
    %551 = vmatpush1.xpose.msra.mxu0 0.0
    %552 = vmatprep.subr.mxu0 0.0
    %553 = vmatpush1.xpose.msra.mxu0 0.0
    %554 = vmatprep.subr.mxu0 0.0
    %555 = vmatpush1.xpose.msra.mxu0 0.0
    %556 = vmatprep.subr.mxu0 0.0
    %557 = vmatpush1.xpose.msra.mxu0 0.0
    %558 = vmatprep.subr.mxu0 0.0
    %559 = vmatpush1.xpose.msra.mxu0 0.0
    %560 = vmatprep.subr.mxu0 0.0
    %561 = vmatpush1.xpose.msra.mxu0 0.0
    %562 = vmatprep.subr.mxu0 0.0
    %563 = vmatpush1.xpose.msra.mxu0 0.0
    %564 = vmatprep.subr.mxu0 0.0
    %565 = vmatpush1.xpose.msra.mxu0 0.0
    %566 = vmatprep.subr.mxu0 0.0
    %567 = vmatpush1.xpose.msra.mxu0 0.0
    %568 = vmatprep.subr.mxu0 0.0
    %569 = vmatpush1.xpose.msra.mxu0 0.0
    %570 = vmatprep.subr.mxu0 0.0
    %571 = vmatpush1.xpose.msra.mxu0 0.0
    %572 = vmatprep.subr.mxu0 0.0
    %573 = vmatpush1.xpose.msra.mxu0 0.0
    %574 = vmatprep.subr.mxu0 0.0
    %575 = vmatpush1.xpose.msra.mxu0 0.0
    %576 = vmatprep.subr.mxu0 0.0
    %577 = vmatpush1.xpose.msra.mxu0 0.0
    %578 = vmatprep.subr.mxu0 0.0
    %579 = vmatpush1.xpose.msra.mxu0 0.0
    %580 = vmatprep.subr.mxu0 0.0
    %581 = vmatpush1.xpose.msra.mxu0 0.0
    %582 = vmatprep.subr.mxu0 0.0
    %583 = vmatpush1.xpose.msra.mxu0 0.0
    %584 = vmatprep.subr.mxu0 0.0
    %585 = vmatpush1.xpose.msra.mxu0 0.0
    %586 = vmatprep.subr.mxu0 0.0
    %587 = vmatpush1.xpose.msra.mxu0 0.0
    %588 = vmatprep.subr.mxu0 0.0
    %589 = vmatpush1.xpose.msra.mxu0 0.0
    %590 = vmatprep.subr.mxu0 0.0
    %591 = vmatpush1.xpose.msra.mxu0 0.0
    %592 = vmatprep.subr.mxu0 0.0
    %593 = vmatpush1.xpose.msra.mxu0 0.0
    %594 = vmatprep.mubr.f32.mxu0 0.0
    %595 = vmatmul.mubr.f32.gmra.mrb[0].mxu0 %v520
    %v596 = vpop.f32.mrb[0].mxu0
    %v597 = vadd.f32 0.0, %v596
    %v598 = vpop.f32.mrb[0].mxu0
    %599 = vdwg.mxu0
    %v602 = vunpack.c.l.s4 1966171168
    %v603 = vunpack.c.0.s8 %v602
    %v604 = vlaneseq
    %v605 = vshrl.u32 %v604, 7
    %v606 = vsub.s32 %v603, %v605
    %v607 = vrot.slane %v597, %v606
    %v608 = vcombine.high %v607, %v607
    %v610 = vunpack.c.l.s4 1966171168
    %v611 = vunpack.c.0.s8 %v610
    %v612 = vlaneseq
    %v613 = vshrl.u32 %v612, 7
    %v614 = vsub.s32 %v611, %v613
    %v615 = vrot.slane %v607, %v614
    %v617 = vunpack.c.l.s4 1966171168
    %v618 = vunpack.c.0.s8 %v617
    %v619 = vlaneseq
    %v620 = vshrl.u32 %v619, 7
    %v621 = vsub.s32 %v618, %v620
    %v622 = vrot.slane %v608, %v621
    %v623 = vcombine.high %v615, %v615
    %v624 = vcombine.high %v622, %v622
    %629 = vst.msk [vmem:[#allocation2 + $0x2] sm:$0x1] %vm382, %v615
    %630 = vst.msk [vmem:[#allocation2 + $0x6] sm:$0x1] %vm382, %v622
    %631 = vst.msk [vmem:[#allocation2 + $0xa] sm:$0x1] %vm382, %v623
    %632 = vst.msk [vmem:[#allocation2 + $0xe] sm:$0x1] %vm382, %v624
    %633 = vrot.lane.b32.xlu0 %v260, 104
    %v634 = vpop.permute.xlu0 %633
    %635 = vrot.lane.b32.xlu0 %v263, 104
    %v636 = vpop.permute.xlu0 %635
    %637 = vrot.lane.b32.xlu0 %v264, 104
    %v638 = vpop.permute.xlu0 %637
    %639 = vrot.lane.b32.xlu0 %v265, 104
    %v640 = vpop.permute.xlu0 %639
    %641 = vrot.lane.b32.xlu0 %v266, 104
    %v642 = vpop.permute.xlu0 %641
    %v643 = vsel %vm267, %v634, 0
    %v645 = vsel %vm267, %v636, 0
    %v647 = vsel %vm267, %v638, 0
    %v649 = vsel %vm267, %v640, 0
    %v651 = vsel %vm267, %v642, 0
    %653 = vmatprep.subr.mxu0 0.0
    %654 = vmatpush1.xpose.msra.mxu0 %v645
    %655 = vmatprep.subr.mxu0 0.0
    %656 = vmatpush1.xpose.msra.mxu0 %v647
    %657 = vmatprep.subr.mxu0 0.0
    %658 = vmatpush1.xpose.msra.mxu0 %v649
    %659 = vmatprep.subr.mxu0 0.0
    %660 = vmatpush1.xpose.msra.mxu0 %v651
    %661 = vmatprep.subr.mxu0 0.0
    %662 = vmatpush1.xpose.msra.mxu0 0.0
    %663 = vmatprep.subr.mxu0 0.0
    %664 = vmatpush1.xpose.msra.mxu0 0.0
    %665 = vmatprep.subr.mxu0 0.0
    %666 = vmatpush1.xpose.msra.mxu0 0.0
    %667 = vmatprep.subr.mxu0 0.0
    %668 = vmatpush1.xpose.msra.mxu0 0.0
    %669 = vmatprep.subr.mxu0 0.0
    %670 = vmatpush1.xpose.msra.mxu0 0.0
    %671 = vmatprep.subr.mxu0 0.0
    %672 = vmatpush1.xpose.msra.mxu0 0.0
    %673 = vmatprep.subr.mxu0 0.0
    %674 = vmatpush1.xpose.msra.mxu0 0.0
    %675 = vmatprep.subr.mxu0 0.0
    %676 = vmatpush1.xpose.msra.mxu0 0.0
    %677 = vmatprep.subr.mxu0 0.0
    %678 = vmatpush1.xpose.msra.mxu0 0.0
    %679 = vmatprep.subr.mxu0 0.0
    %680 = vmatpush1.xpose.msra.mxu0 0.0
    %681 = vmatprep.subr.mxu0 0.0
    %682 = vmatpush1.xpose.msra.mxu0 0.0
    %683 = vmatprep.subr.mxu0 0.0
    %684 = vmatpush1.xpose.msra.mxu0 0.0
    %685 = vmatprep.subr.mxu0 0.0
    %686 = vmatpush1.xpose.msra.mxu0 0.0
    %687 = vmatprep.subr.mxu0 0.0
    %688 = vmatpush1.xpose.msra.mxu0 0.0
    %689 = vmatprep.subr.mxu0 0.0
    %690 = vmatpush1.xpose.msra.mxu0 0.0
    %691 = vmatprep.subr.mxu0 0.0
    %692 = vmatpush1.xpose.msra.mxu0 0.0
    %693 = vmatprep.subr.mxu0 0.0
    %694 = vmatpush1.xpose.msra.mxu0 0.0
    %695 = vmatprep.subr.mxu0 0.0
    %696 = vmatpush1.xpose.msra.mxu0 0.0
    %697 = vmatprep.subr.mxu0 0.0
    %698 = vmatpush1.xpose.msra.mxu0 0.0
    %699 = vmatprep.subr.mxu0 0.0
    %700 = vmatpush1.xpose.msra.mxu0 0.0
    %701 = vmatprep.subr.mxu0 0.0
    %702 = vmatpush1.xpose.msra.mxu0 0.0
    %703 = vmatprep.subr.mxu0 0.0
    %704 = vmatpush1.xpose.msra.mxu0 0.0
    %705 = vmatprep.subr.mxu0 0.0
    %706 = vmatpush1.xpose.msra.mxu0 0.0
    %707 = vmatprep.subr.mxu0 0.0
    %708 = vmatpush1.xpose.msra.mxu0 0.0
    %709 = vmatprep.subr.mxu0 0.0
    %710 = vmatpush1.xpose.msra.mxu0 0.0
    %711 = vmatprep.subr.mxu0 0.0
    %712 = vmatpush1.xpose.msra.mxu0 0.0
    %713 = vmatprep.subr.mxu0 0.0
    %714 = vmatpush1.xpose.msra.mxu0 0.0
    %715 = vmatprep.subr.mxu0 0.0
    %716 = vmatpush1.xpose.msra.mxu0 0.0
    %717 = vmatprep.mubr.f32.mxu0 0.0
    %718 = vmatmul.mubr.f32.gmra.mrb[0].mxu0 %v643
    %v719 = vpop.f32.mrb[0].mxu0
    %v720 = vadd.f32 0.0, %v719
    %v721 = vpop.f32.mrb[0].mxu0
    %722 = vdwg.mxu0
    %v725 = vunpack.c.l.s4 1966171168
    %v726 = vunpack.c.0.s8 %v725
    %v727 = vlaneseq
    %v728 = vshrl.u32 %v727, 7
    %v729 = vsub.s32 %v726, %v728
    %v730 = vrot.slane %v720, %v729
    %v731 = vcombine.high %v730, %v730
    %v733 = vunpack.c.l.s4 1966171168
    %v734 = vunpack.c.0.s8 %v733
    %v735 = vlaneseq
    %v736 = vshrl.u32 %v735, 7
    %v737 = vsub.s32 %v734, %v736
    %v738 = vrot.slane %v730, %v737
    %v740 = vunpack.c.l.s4 1966171168
    %v741 = vunpack.c.0.s8 %v740
    %v742 = vlaneseq
    %v743 = vshrl.u32 %v742, 7
    %v744 = vsub.s32 %v741, %v743
    %v745 = vrot.slane %v731, %v744
    %v746 = vcombine.high %v738, %v738
    %v747 = vcombine.high %v745, %v745
    %752 = vst.msk [vmem:[#allocation2 + $0x3] sm:$0x1] %vm382, %v738
    %753 = vst.msk [vmem:[#allocation2 + $0x7] sm:$0x1] %vm382, %v745
    %754 = vst.msk [vmem:[#allocation2 + $0xb] sm:$0x1] %vm382, %v746
    %755 = vst.msk [vmem:[#allocation2 + $0xf] sm:$0x1] %vm382, %v747
    // Predicated region
    $region30: #{tpu_custom_call.1} parent=1 // pred_check
      _
    $region31: #{tpu_custom_call.1} parent=1 // pred_check_branch
      %757 = sbr.rel (0) target = $region33
    $region32: #{tpu_custom_call.1} parent=1 // pred_region
      %s759 = ssub.s32 256, 256
      %760 = vsyncadd [#allocation3], %s759
      %s761 = sshll.u32 [#allocation2], 4
      %s762 = int_to_ptr.vmem [resolvable:$true] %s761
      %767 = dma.vmem_to_hbm [thread:$0]  %s762, 256, %s7, [#allocation3], 64, 64, 4
    $region33: #{tpu_custom_call.1} parent=1 // pred_fallthru
      _
    // Predicated region
    $region34: #{tpu_custom_call.1} parent=1 // pred_check
      _
    $region35: #{tpu_custom_call.1} parent=1 // pred_check_branch
      %769 = sbr.rel (0) target = $region37
    $region36: #{tpu_custom_call.1} parent=1 // pred_region
      %770 = dma.done [#allocation3], 256
    $region37: #{tpu_custom_call.1} parent=1 // pred_fallthru
      _
    %771 = vsyncpa [#allocation3], 1

</llo_original>
